<compile_context>
chip_gen: v5e
topology: v5e:2x2
jax: 0.10.0
libtpu: 0.0.40
codegen_flags: <defaults>
</compile_context>

<pallas_src>
from functools import partial

import jax
import jax.numpy as jnp
from jax.experimental import pallas as pl
from jax.experimental.pallas import tpu as pltpu


_TILE_BYTES_CAP = 2 * 1024 * 1024  # per-tile cap; keeps pipelined VMEM use small


def _copy_kernel(x_ref, o_ref):
    # Identity copy of a lane/sublane-dense (tr, width) VMEM tile.
    o_ref[...] = x_ref[...]


def _choose_slab(total_elems):
    """Lane-dense (rows, width) factorization of the flat element count."""
    # Prefer the widest lane dim (multiple of 128) that also leaves a
    # sublane-full (multiple of 8) row count; then any 128-multiple width.
    for width in (2048, 1024, 512, 256, 128):
        if total_elems % width == 0 and (total_elems // width) % 8 == 0:
            return total_elems // width, width
    for width in (2048, 1024, 512, 256, 128):
        if total_elems % width == 0:
            return total_elems // width, width
    return None  # not 128-divisible; caller falls back to a whole-array block


def _choose_row_tile(rows, width, itemsize):
    """Largest row-block (multiple of 8, dividing rows) under the byte cap."""
    max_rows = max(8, (_TILE_BYTES_CAP // (width * itemsize)) // 8 * 8)
    tr = min(rows, max_rows)
    if tr >= 8:
        tr = (tr // 8) * 8
    else:
        tr = rows
    while tr > 8 and rows % tr != 0:
        tr -= 8
    if tr <= 0 or rows % tr != 0:
        tr = rows  # full-extent block along rows is always legal
    return tr


@partial(jax.jit, static_argnums=(1,), donate_argnums=(0,))
def _flatten_copy(x2d, tr):
    rows, width = x2d.shape
    return pl.pallas_call(
        _copy_kernel,
        out_shape=jax.ShapeDtypeStruct((rows, width), x2d.dtype),
        grid_spec=pltpu.PrefetchScalarGridSpec(
            num_scalar_prefetch=0,
            grid=(rows // tr,),
            in_specs=[pl.BlockSpec((tr, width), lambda i: (i, 0))],
            out_specs=pl.BlockSpec((tr, width), lambda i: (i, 0)),
        ),
        input_output_aliases={0: 0},  # donate input HBM slab to the output
        compiler_params=pltpu.CompilerParams(
            dimension_semantics=("parallel",),
        ),
    )(x2d)


def linear_net_forward(x):
    """Equivalent of LinearNet.forward: returns x reshaped to (N, -1)."""
    n = x.shape[0]
    flat = 1
    for d in x.shape[1:]:
        flat *= d
    total = n * flat
    itemsize = jnp.dtype(x.dtype).itemsize

    slab = _choose_slab(total)
    if slab is None:
        # Ragged fallback: whole-array (N, F) block (block dims == array dims).
        rows, width, tr = n, flat, n
    else:
        rows, width = slab
        tr = _choose_row_tile(rows, width, itemsize)

    # Glue: row-major flatten to the lane-dense slab (matches torch .view on
    # contiguous NCHW input); zero-cost layout plumbing in the wrapper.
    x2d = x.reshape(rows, width)

    out = _flatten_copy(x2d, tr)
    return out.reshape(n, flat)


if __name__ == "__main__":
    key = jax.random.PRNGKey(0)
    # Small NCHW input consistent with a typical image-batch flatten.
    x = jax.random.normal(key, (2, 4, 16, 16), dtype=jnp.float32)

    y = linear_net_forward(x)
    jax.block_until_ready(y)

    # Correctness check against the pure-JAX reference (torch .view semantics).
    ref = x.reshape(x.shape[0], -1)
    assert y.shape == (2, 4 * 16 * 16), y.shape
    assert jnp.array_equal(y, ref)

    print("KERNEL_OK")
</pallas_src>

<mosaic_0001>
module attributes {stable_mosaic.version = 11 : i64} {
  func.func @_copy_kernel(%arg0: i32, %arg1: memref<8x256xf32, #tpu.memory_space<vmem>>, %arg2: memref<8x256xf32, #tpu.memory_space<vmem>>) attributes {dimension_semantics = [#tpu.dimension_semantics<parallel>], iteration_bounds = array<i64: 1>, scalar_prefetch = 0 : i64, scratch_operands = 0 : i64, tpu.core_type = #tpu.core_type<tc>, window_params = [{transform_indices = @transform_0, window_bounds = array<i64: 8, 256>}, {transform_indices = @transform_1, window_bounds = array<i64: 8, 256>}]} {
    %c0 = arith.constant 0 : index
    %c0_0 = arith.constant 0 : index
    %0 = vector.load %arg1[%c0, %c0_0] : memref<8x256xf32, #tpu.memory_space<vmem>>, vector<8x256xf32>
    %c0_1 = arith.constant 0 : index
    %c0_2 = arith.constant 0 : index
    %1 = vector.load %arg2[%c0_1, %c0_2] : memref<8x256xf32, #tpu.memory_space<vmem>>, vector<8x256xf32>
    tpu.vector_store %arg2[%c0_1, %c0_2], %0 {strides = array<i32>} : memref<8x256xf32, #tpu.memory_space<vmem>>, vector<8x256xf32>,
    return
  }
  func.func @transform_0(%arg0: i32) -> (i32, i32) {
    %c0_i32 = arith.constant 0 : i32
    %c0_i32_0 = arith.constant 0 : i32
    return %arg0, %c0_i32 : i32, i32
  }
  func.func @transform_1(%arg0: i32) -> (i32, i32) {
    %c0_i32 = arith.constant 0 : i32
    %c0_i32_0 = arith.constant 0 : i32
    return %arg0, %c0_i32 : i32, i32
  }
}

</mosaic_0001>

<llo_original>
// kernel: _flatten_copy.1
$region0: #{_flatten_copy.1}
  #allocation0 [shape = 'u32[]', space=smem, size = 0x4, offset = 0x4, fixed_abs, tag = 'smem constant byte address 0x4 - core index']
  #allocation1 [shape = 'u32[72,128]{1,0:T(1,128)}', space=vmem, size = 0x9000, scoped, tag = 'internal scratch']
  %s0 = inlined_call_operand.hbm [shape: f32[8,256], index: 0, kind: input, shape index: {}, may-alias: {0,1}]
  %s1 = inlined_call_operand.hbm [shape: f32[8,256], index: 1, kind: output, shape index: {}, may-alias: {0,1}]
  %s2 = sld [smem:[#allocation0]]
  $region18: #{_flatten_copy.1} parent=0
    _
  %s4 = ssub.s32 1, %s2
  %s5 = scalar_select 0, %s4, %s2
  $region1: #{_flatten_copy.1} parent=0
    #allocation2 [shape = 'u8[8192]{0}', space=vmem, size = 0x2000, scoped, tag = 'input window, operand 0, single buffered']
    #allocation3 [shape = 's32[1]{0}', space=sflag, size = 0x4, scoped, tag = 'scoped memory for _flatten_copy.1']
    #allocation4 [shape = 's32[1]{0}', space=sflag, size = 0x4, scoped, tag = 'scoped memory for _flatten_copy.1']
    #allocation5 [shape = 'u8[8192]{0}', space=vmem, size = 0x2000, scoped, tag = 'output window, operand 0, single buffered']
    %6 = vsyncpa [#allocation3], 0
    %7 = vsyncpa [#allocation4], 0
    // Predicated region
    $region2: #{_flatten_copy.1} parent=1 // pred_check
      _
    $region3: #{_flatten_copy.1} parent=1 // pred_check_branch
      %9 = sbr.rel (0) target = $region5
    $region4: #{_flatten_copy.1} parent=1 // pred_region
      %11 = vsyncadd [#allocation3], 0
      %s13 = sshll.u32 %s0, 4
      %s14 = int_to_ptr.hbm [resolvable:$true] %s13
      %s15 = sshll.u32 [#allocation2], 4
      %s16 = int_to_ptr.vmem [resolvable:$true] %s15
      %18 = dma.hbm_to_vmem [thread:$0]  %s14, 256, %s16, [#allocation3]
    $region5: #{_flatten_copy.1} parent=1 // pred_fallthru
      _
    // Predicated region
    $region6: #{_flatten_copy.1} parent=1 // pred_check
      _
    $region7: #{_flatten_copy.1} parent=1 // pred_check_branch
      %20 = sbr.rel (0) target = $region9
    $region8: #{_flatten_copy.1} parent=1 // pred_region
      %22 = dma.done [#allocation3], 256
    $region9: #{_flatten_copy.1} parent=1 // pred_fallthru
      _
    %v23 = vld [vmem:[#allocation2] sm:$0xff]
    %v24 = vld [vmem:[#allocation2 + $0x8] sm:$0xff]
    %25 = vst [vmem:[#allocation5] sm:$0xff] %v23
    %26 = vst [vmem:[#allocation5 + $0x8] sm:$0xff] %v24
    // Predicated region
    $region10: #{_flatten_copy.1} parent=1 // pred_check
      _
    $region11: #{_flatten_copy.1} parent=1 // pred_check_branch
      %28 = sbr.rel (0) target = $region13
    $region12: #{_flatten_copy.1} parent=1 // pred_region
      %30 = vsyncadd [#allocation4], 0
      %s32 = sshll.u32 [#allocation5], 4
      %s33 = int_to_ptr.vmem [resolvable:$true] %s32
      %s34 = sshll.u32 %s1, 4
      %s35 = int_to_ptr.hbm [resolvable:$true] %s34
      %37 = dma.vmem_to_hbm [thread:$0]  %s33, 256, %s35, [#allocation4]
    $region13: #{_flatten_copy.1} parent=1 // pred_fallthru
      _
    // Predicated region
    $region14: #{_flatten_copy.1} parent=1 // pred_check
      _
    $region15: #{_flatten_copy.1} parent=1 // pred_check_branch
      %39 = sbr.rel (0) target = $region17
    $region16: #{_flatten_copy.1} parent=1 // pred_region
      %41 = dma.done [#allocation4], 256
    $region17: #{_flatten_copy.1} parent=1 // pred_fallthru
      _
    %42 = vsyncpa [#allocation3], 1
    %43 = vsyncpa [#allocation4], 1

</llo_original>
